<compile_context>
chip_gen: v7x
topology: tpu7x:2x2x1
jax: 0.10.0
libtpu: 0.0.40
codegen_flags: <defaults>
</compile_context>

<pallas_src>
import functools

import jax
import jax.numpy as jnp
from jax.experimental import pallas as pl
from jax.experimental.pallas import tpu as pltpu


def _round_up(x: int, m: int) -> int:
    return (x + m - 1) // m * m


def _prototype_loss_kernel(label_ref, proto_ref, feat_ref, out_ref, *,
                           inv_temp: float, threshold: float,
                           n_valid: int, c_valid: int, tile_n: int):
    feat = feat_ref[...]             # [TN, Dp]  f32
    proto = proto_ref[...]           # [Cp, Dp]  f32 (resident across grid)
    label = label_ref[...]           # [TN, Cp]  f32

    tn, cp = label.shape

    # sim = feat @ prototypes.T / temperature   (MXU; contracting dims (1,1), no .T)
    sim = jax.lax.dot_general(
        feat, proto, (((1,), (1,)), ((), ())),
        preferred_element_type=jnp.float32) * inv_temp            # [TN, Cp]

    col_ids = jax.lax.broadcasted_iota(jnp.int32, (tn, cp), 1)
    col_valid = col_ids < c_valid
    sim = jnp.where(col_valid, sim, -1e30)                        # kill padded classes

    # softmax pieces: exp over N*C, everything else N*1
    sim_max = jnp.max(sim, axis=1, keepdims=True)                 # [TN, 1]
    e = jnp.exp(sim - sim_max)                                    # [TN, Cp]
    denom = jnp.sum(e, axis=1, keepdims=True)                     # [TN, 1]

    # torch.max(label, dim=1): value + first-argmax -> one-hot hard label
    label_m = jnp.where(col_valid, label, -jnp.inf)
    max_prob = jnp.max(label_m, axis=1, keepdims=True)            # [TN, 1]
    is_max = label_m == max_prob
    max_id = jnp.min(jnp.where(is_max, col_ids, cp), axis=1, keepdims=True)
    hard = (col_ids == max_id).astype(jnp.float32)                # one-hot [TN, Cp]

    # log(softmax + 1e-7) evaluated only at the argmax class
    p_at = jnp.sum(e * hard, axis=1, keepdims=True)               # [TN, 1]
    per_sample = -jnp.log(p_at / denom + 1e-07)                   # [TN, 1]

    conf_mask = (max_prob >= threshold).astype(jnp.float32)       # [TN, 1]

    # mask rows that are padding beyond the true N
    row_ids = pl.program_id(0) * tile_n + jax.lax.broadcasted_iota(
        jnp.int32, (tn, 1), 0)
    row_valid = (row_ids < n_valid).astype(jnp.float32)           # [TN, 1]

    partial = jnp.sum(per_sample * conf_mask * row_valid)         # scalar per tile
    out_ref[...] = jnp.full((8, 128), partial, dtype=jnp.float32)


def prototype_loss(label, prototypes, feat, *, temperature: float,
                   threshold: float, tile_n: int = 512):
    """label: [N, C], prototypes: [C, D], feat: [N, D] -> scalar f32 loss."""
    n, d = feat.shape
    c = prototypes.shape[0]
    assert label.shape == (n, c)
    assert prototypes.shape == (c, d)

    # lane-dense padding of C/D; sublane-aligned tiling of N
    d_pad = max(128, _round_up(d, 128))
    c_pad = max(128, _round_up(c, 128))
    tn = _round_up(min(tile_n, _round_up(n, 8)), 8)
    n_pad = _round_up(n, tn)
    num_tiles = n_pad // tn

    f32 = jnp.float32
    feat_p = jnp.pad(feat.astype(f32), ((0, n_pad - n), (0, d_pad - d)))
    label_p = jnp.pad(label.astype(f32), ((0, n_pad - n), (0, c_pad - c)))
    proto_p = jnp.pad(prototypes.astype(f32), ((0, c_pad - c), (0, d_pad - d)))

    kernel = functools.partial(
        _prototype_loss_kernel,
        inv_temp=float(1.0 / temperature), threshold=float(threshold),
        n_valid=n, c_valid=c, tile_n=tn)

    partials = pl.pallas_call(
        kernel,
        grid=(num_tiles,),
        in_specs=[
            pl.BlockSpec((tn, c_pad), lambda i: (i, 0)),      # label tile
            pl.BlockSpec((c_pad, d_pad), lambda i: (0, 0)),   # prototypes (resident)
            pl.BlockSpec((tn, d_pad), lambda i: (i, 0)),      # feat tile
        ],
        out_specs=pl.BlockSpec((8, 128), lambda i: (i, 0)),
        out_shape=jax.ShapeDtypeStruct((num_tiles * 8, 128), jnp.float32),
        compiler_params=pltpu.CompilerParams(
            dimension_semantics=("parallel",)),
    )(label_p, proto_p, feat_p)

    # tiny final reduction (+ /N) outside the kernel
    per_tile = partials.reshape(num_tiles, 8, 128)[:, 0, 0]
    return jnp.sum(per_tile) / jnp.float32(n)


def prototype_loss_ref(label, prototypes, feat, *, temperature, threshold):
    """Pure-JAX reference (mirrors the PyTorch module)."""
    sim = (feat @ prototypes.T) / temperature
    sim = jax.nn.softmax(sim, axis=1)
    log_sim = jnp.log(sim + 1e-07)
    max_prob = jnp.max(label, axis=1)
    max_id = jnp.argmax(label, axis=1)
    conf_mask = (max_prob >= threshold).astype(jnp.float32)
    hard = jax.nn.one_hot(max_id, label.shape[1], dtype=jnp.float32)
    loss = -jnp.sum(log_sim * hard, axis=1)
    return jnp.mean(loss * conf_mask)


if __name__ == "__main__":
    N, C, D = 24, 10, 48
    temperature = 0.5
    threshold = 0.3

    key = jax.random.PRNGKey(0)
    k1, k2, k3 = jax.random.split(key, 3)

    # label = row-wise probability distribution (like softmax outputs)
    label = jax.nn.softmax(jax.random.normal(k1, (N, C), jnp.float32) * 2.0, axis=1)
    prototypes = jax.random.normal(k2, (C, D), jnp.float32)
    feat = jax.random.normal(k3, (N, D), jnp.float32)

    # small tile so the run exercises multi-tile pipelining + padded-row masking
    out = prototype_loss(label, prototypes, feat,
                         temperature=temperature, threshold=threshold,
                         tile_n=16)
    out = jax.block_until_ready(out)

    ref = prototype_loss_ref(label, prototypes, feat,
                             temperature=temperature, threshold=threshold)
    assert jnp.allclose(out, ref, rtol=1e-5, atol=1e-5), (out, ref)

    print("KERNEL_OK")
</pallas_src>

<mosaic_0001>
module attributes {stable_mosaic.version = 11 : i64} {
  func.func @_prototype_loss_kernel(%arg0: i32, %arg1: memref<16x128xf32, #tpu.memory_space<vmem>>, %arg2: memref<128x128xf32, #tpu.memory_space<vmem>>, %arg3: memref<16x128xf32, #tpu.memory_space<vmem>>, %arg4: memref<8x128xf32, #tpu.memory_space<vmem>>) attributes {dimension_semantics = [#tpu.dimension_semantics<parallel>], iteration_bounds = array<i64: 2>, scalar_prefetch = 0 : i64, scratch_operands = 0 : i64, tpu.core_type = #tpu.core_type<tc>, window_params = [{transform_indices = @transform_0, window_bounds = array<i64: 16, 128>}, {pipeline_mode = #tpu.pipeline_mode<synchronous>, transform_indices = @transform_1, window_bounds = array<i64: 128, 128>}, {transform_indices = @transform_2, window_bounds = array<i64: 16, 128>}, {transform_indices = @transform_3, window_bounds = array<i64: 8, 128>}]} {
    %c0 = arith.constant 0 : index
    %c0_0 = arith.constant 0 : index
    %0 = vector.load %arg3[%c0, %c0_0] : memref<16x128xf32, #tpu.memory_space<vmem>>, vector<16x128xf32>
    %c0_1 = arith.constant 0 : index
    %c0_2 = arith.constant 0 : index
    %1 = vector.load %arg2[%c0_1, %c0_2] : memref<128x128xf32, #tpu.memory_space<vmem>>, vector<128x128xf32>
    %c0_3 = arith.constant 0 : index
    %c0_4 = arith.constant 0 : index
    %2 = vector.load %arg1[%c0_3, %c0_4] : memref<16x128xf32, #tpu.memory_space<vmem>>, vector<16x128xf32>
    %cst = arith.constant dense<0.000000e+00> : vector<16x128xf32>
    %3 = tpu.matmul %0, %1, %cst {dimension_numbers = #tpu.dot_dimension_numbers<[1], [1], [0], [0], [0, 0, 1, 0], [], []>} : vector<16x128xf32>, vector<128x128xf32>, vector<16x128xf32> -> vector<16x128xf32>
    %cst_5 = arith.constant 2.000000e+00 : f32
    %4 = vector.broadcast %cst_5 : f32 to vector<16x128xf32>
    %5 = arith.mulf %3, %4 : vector<16x128xf32>
    %6 = tpu.iota {dimensions = array<i32: 1>} : vector<16x128xi32>
    %c10_i32 = arith.constant 10 : i32
    %7 = vector.broadcast %c10_i32 : i32 to vector<16x128xi32>
    %8 = arith.cmpi slt, %6, %7 : vector<16x128xi32>
    %cst_6 = arith.constant -1.000000e+30 : f32
    %9 = vector.broadcast %cst_6 : f32 to vector<16x128xf32>
    %10 = arith.select %8, %5, %9 : vector<16x128xi1>, vector<16x128xf32>
    %cst_7 = arith.constant dense<0xFF800000> : vector<16xf32>
    %11 = vector.multi_reduction <maximumf>, %10, %cst_7 [1] : vector<16x128xf32> to vector<16xf32>
    %12 = vector.shape_cast %11 : vector<16xf32> to vector<16x1xf32>
    %13 = vector.broadcast %12 : vector<16x1xf32> to vector<16x128xf32>
    %14 = arith.subf %10, %13 : vector<16x128xf32>
    %15 = math.exp %14 : vector<16x128xf32>
    %cst_8 = arith.constant dense<0.000000e+00> : vector<16xf32>
    %16 = vector.multi_reduction <add>, %15, %cst_8 [1] : vector<16x128xf32> to vector<16xf32>
    %17 = vector.shape_cast %16 : vector<16xf32> to vector<16x1xf32>
    %cst_9 = arith.constant 0xFF800000 : f32
    %18 = vector.broadcast %cst_9 : f32 to vector<16x128xf32>
    %19 = arith.select %8, %2, %18 : vector<16x128xi1>, vector<16x128xf32>
    %cst_10 = arith.constant dense<0xFF800000> : vector<16xf32>
    %20 = vector.multi_reduction <maximumf>, %19, %cst_10 [1] : vector<16x128xf32> to vector<16xf32>
    %21 = vector.shape_cast %20 : vector<16xf32> to vector<16x1xf32>
    %22 = vector.broadcast %21 : vector<16x1xf32> to vector<16x128xf32>
    %23 = arith.cmpf oeq, %19, %22 : vector<16x128xf32>
    %c128_i32 = arith.constant 128 : i32
    %24 = vector.broadcast %c128_i32 : i32 to vector<16x128xi32>
    %25 = arith.select %23, %6, %24 : vector<16x128xi1>, vector<16x128xi32>
    %cst_11 = arith.constant dense<2147483647> : vector<16xi32>
    %26 = vector.multi_reduction <minsi>, %25, %cst_11 [1] : vector<16x128xi32> to vector<16xi32>
    %27 = vector.shape_cast %26 : vector<16xi32> to vector<16x1xi32>
    %28 = vector.broadcast %27 : vector<16x1xi32> to vector<16x128xi32>
    %29 = arith.cmpi eq, %6, %28 : vector<16x128xi32>
    %30 = arith.extui %29 : vector<16x128xi1> to vector<16x128xi32>
    %31 = arith.sitofp %30 : vector<16x128xi32> to vector<16x128xf32>
    %32 = arith.mulf %15, %31 : vector<16x128xf32>
    %cst_12 = arith.constant dense<0.000000e+00> : vector<16xf32>
    %33 = vector.multi_reduction <add>, %32, %cst_12 [1] : vector<16x128xf32> to vector<16xf32>
    %34 = vector.shape_cast %33 : vector<16xf32> to vector<16x1xf32>
    %35 = arith.divf %34, %17 : vector<16x1xf32>
    %cst_13 = arith.constant 1.000000e-07 : f32
    %36 = vector.broadcast %cst_13 : f32 to vector<16x1xf32>
    %37 = arith.addf %35, %36 : vector<16x1xf32>
    %38 = math.log %37 : vector<16x1xf32>
    %cst_14 = arith.constant 0.000000e+00 : f32
    %39 = vector.broadcast %cst_14 : f32 to vector<16x1xf32>
    %40 = arith.subf %39, %38 : vector<16x1xf32>
    %cst_15 = arith.constant 3.000000e-01 : f32
    %41 = vector.broadcast %cst_15 : f32 to vector<16x1xf32>
    %42 = arith.cmpf oge, %21, %41 : vector<16x1xf32>
    %43 = arith.extui %42 : vector<16x1xi1> to vector<16x1xi32>
    %44 = arith.sitofp %43 : vector<16x1xi32> to vector<16x1xf32>
    %c16_i32 = arith.constant 16 : i32
    %45 = arith.muli %arg0, %c16_i32 : i32
    %46 = tpu.iota {dimensions = array<i32: 0>} : vector<16x1xi32>
    %47 = vector.broadcast %45 : i32 to vector<16x1xi32>
    %48 = arith.addi %47, %46 : vector<16x1xi32>
    %c24_i32 = arith.constant 24 : i32
    %49 = vector.broadcast %c24_i32 : i32 to vector<16x1xi32>
    %50 = arith.cmpi slt, %48, %49 : vector<16x1xi32>
    %51 = arith.extui %50 : vector<16x1xi1> to vector<16x1xi32>
    %52 = arith.sitofp %51 : vector<16x1xi32> to vector<16x1xf32>
    %53 = arith.mulf %40, %44 : vector<16x1xf32>
    %54 = arith.mulf %53, %52 : vector<16x1xf32>
    %55 = vector.shape_cast %54 : vector<16x1xf32> to vector<1x16x1xf32>
    %cst_16 = arith.constant dense<0.000000e+00> : vector<1xf32>
    %56 = vector.multi_reduction <add>, %55, %cst_16 [1, 2] : vector<1x16x1xf32> to vector<1xf32>
    %57 = vector.shape_cast %56 : vector<1xf32> to vector<1x1x1xf32>
    %58 = vector.extract %57[0, 0, 0] : f32 from vector<1x1x1xf32>
    %59 = vector.broadcast %58 : f32 to vector<8x128xf32>
    %c0_17 = arith.constant 0 : index
    %c0_18 = arith.constant 0 : index
    %60 = vector.load %arg4[%c0_17, %c0_18] : memref<8x128xf32, #tpu.memory_space<vmem>>, vector<8x128xf32>
    tpu.vector_store %arg4[%c0_17, %c0_18], %59 {strides = array<i32>} : memref<8x128xf32, #tpu.memory_space<vmem>>, vector<8x128xf32>,
    return
  }
  func.func @transform_0(%arg0: i32) -> (i32, i32) {
    %c0_i32 = arith.constant 0 : i32
    %c0_i32_0 = arith.constant 0 : i32
    return %arg0, %c0_i32 : i32, i32
  }
  func.func @transform_1(%arg0: i32) -> (i32, i32) {
    %c0_i32 = arith.constant 0 : i32
    %c0_i32_0 = arith.constant 0 : i32
    %c0_i32_1 = arith.constant 0 : i32
    return %c0_i32, %c0_i32_0 : i32, i32
  }
  func.func @transform_2(%arg0: i32) -> (i32, i32) {
    %c0_i32 = arith.constant 0 : i32
    %c0_i32_0 = arith.constant 0 : i32
    return %arg0, %c0_i32 : i32, i32
  }
  func.func @transform_3(%arg0: i32) -> (i32, i32) {
    %c0_i32 = arith.constant 0 : i32
    %c0_i32_0 = arith.constant 0 : i32
    return %arg0, %c0_i32 : i32, i32
  }
}

</mosaic_0001>

<llo_original>
// kernel: tpu_custom_call.1
$region0: #{tpu_custom_call.1}
  #allocation0 [shape = 'u32[]', space=smem, size = 0x4, offset = 0x4, fixed_abs, tag = 'smem constant byte address 0x4 - core index']
  #allocation1 [shape = 'u32[144,128]{1,0:T(1,128)}', space=vmem, size = 0x12000, scoped, tag = 'internal scratch']
  %s0 = inlined_call_operand.hbm [shape: f32[32,128], index: 0, kind: input, shape index: {}]
  %s1 = inlined_call_operand.hbm [shape: f32[128,128], index: 1, kind: input, shape index: {}]
  %s2 = inlined_call_operand.hbm [shape: f32[32,128], index: 2, kind: input, shape index: {}]
  %s3 = inlined_call_operand.hbm [shape: f32[16,128], index: 3, kind: output, shape index: {}]
  %s4 = sld [smem:[#allocation0]]
  $region57: #{tpu_custom_call.1} parent=0
    _
  %s6 = ssub.s32 1, %s4
  %s7 = scalar_select 0, %s6, %s4
  $region1: #{tpu_custom_call.1} parent=0
    #allocation2 [shape = 'u8[16384]{0}', space=vmem, size = 0x4000, scoped, tag = 'input window, operand 0']
    #allocation3 [shape = 's32[2]{0}', space=sflag, size = 0x8, scoped, tag = 'scoped memory for tpu_custom_call.1']
    #allocation4 [shape = 's32[2]{0}', space=sflag, size = 0x8, scoped, tag = 'scoped memory for tpu_custom_call.1']
    #allocation5 [shape = 'u8[65536]{0}', space=vmem, size = 0x10000, scoped, tag = 'input window, operand 1, single buffered']
    #allocation6 [shape = 's32[1]{0}', space=sflag, size = 0x4, scoped, tag = 'scoped memory for tpu_custom_call.1']
    #allocation7 [shape = 'u8[16384]{0}', space=vmem, size = 0x4000, scoped, tag = 'input window, operand 2']
    #allocation8 [shape = 'u8[8192]{0}', space=vmem, size = 0x2000, scoped, tag = 'output window, operand 0']
    %8 = vsyncpa [#allocation3], 0
    %s9 = scalar_lea.sflag [#allocation3], 1
    %10 = vsyncpa %s9, 0
    %11 = vsyncpa [#allocation6], 0
    %12 = vsyncpa [#allocation4], 0
    %s13 = scalar_lea.sflag [#allocation4], 1
    %14 = vsyncpa %s13, 0
    loop: start=0, step=1, limit=4
    $region2: #{tpu_custom_call.1} parent=1 // loop_pre_header
      _
    $region3: #{tpu_custom_call.1} parent=1 // loop_header
      %s16 = sphi 0, %s20
      %p17 = scmp.ge.s32.totalorder %s16, 4
      %s26 = sphi 0, %s28
      %s29 = sphi 0, %s26
      %s30 = sphi 0, %s29
      %s46 = sphi 0, %s30
      %s50 = sphi 0, %s50
      %s52 = sphi 0, %s50
      %s53 = sphi 0, %s52
      %s67 = sphi 0, %s53
      %s73 = sphi 0, %s75
      %s76 = sphi 0, %s73
      %s77 = sphi 0, %s76
      %s93 = sphi 0, %s77
      %s99 = sphi 0, %s101
      %s102 = sphi 0, %s99
      %s103 = sphi 0, %s102
      %s119 = sphi 0, %s103
    $region4: #{tpu_custom_call.1} parent=1 // loop_header_branch
      %19 = sbr.rel (%p17) target = $region8
    $region5: #{tpu_custom_call.1} parent=1 // loop_body
      %s21 = ssub.s32 %s16, 1
      %s22 = ssub.s32 %s16, 2
      %s23 = sadd.s32 %s16, 1
      %s24 = ssub.s32 %s16, %s23
      %p25 = scmp.eq.s32.totalorder %s24, 0
      %s27 = sadd.s32 %s26, 1
      %s28 = scalar_select %p25, %s26, %s27
      %p31 = pneg %p25
      %p32 = scmp.eq.s32.totalorder %s16, 1
      %p33 = por %p31, %p32
      %p34 = scmp.ne.s32.totalorder %s26, %s29
      %p35 = scmp.eq.s32.totalorder %s16, 0
      %p36 = por %p34, %p35
      %p37 = scmp.ne.s32.totalorder %s26, %s29
      %p38 = scmp.eq.s32.totalorder %s21, 1
      %p39 = por %p37, %p38
      %p40 = scmp.ne.s32.totalorder %s29, %s30
      %p41 = scmp.eq.s32.totalorder %s21, 0
      %p42 = por %p40, %p41
      %p43 = scmp.ne.s32.totalorder %s29, %s30
      %p44 = scmp.eq.s32.totalorder %s22, 1
      %p45 = por %p43, %p44
      %p47 = scmp.ne.s32.totalorder %s30, %s46
      %p48 = scmp.eq.s32.totalorder %s22, 0
      %p49 = por %p47, %p48
      %s51 = sadd.s32 %s50, 1
      %p54 = scmp.eq.s32.totalorder %s16, 1
      %p55 = scmp.ne.s32.totalorder %s50, %s52
      %p56 = scmp.eq.s32.totalorder %s16, 0
      %p57 = por %p55, %p56
      %p58 = scmp.ne.s32.totalorder %s50, %s52
      %p59 = scmp.eq.s32.totalorder %s21, 1
      %p60 = por %p58, %p59
      %p61 = scmp.ne.s32.totalorder %s52, %s53
      %p62 = scmp.eq.s32.totalorder %s21, 0
      %p63 = por %p61, %p62
      %p64 = scmp.ne.s32.totalorder %s52, %s53
      %p65 = scmp.eq.s32.totalorder %s22, 1
      %p66 = por %p64, %p65
      %p68 = scmp.ne.s32.totalorder %s53, %s67
      %p69 = scmp.eq.s32.totalorder %s22, 0
      %p70 = por %p68, %p69
      %s71 = ssub.s32 %s16, %s23
      %p72 = scmp.eq.s32.totalorder %s71, 0
      %s74 = sadd.s32 %s73, 1
      %s75 = scalar_select %p72, %s73, %s74
      %p78 = pneg %p72
      %p79 = scmp.eq.s32.totalorder %s16, 1
      %p80 = por %p78, %p79
      %p81 = scmp.ne.s32.totalorder %s73, %s76
      %p82 = scmp.eq.s32.totalorder %s16, 0
      %p83 = por %p81, %p82
      %p84 = scmp.ne.s32.totalorder %s73, %s76
      %p85 = scmp.eq.s32.totalorder %s21, 1
      %p86 = por %p84, %p85
      %p87 = scmp.ne.s32.totalorder %s76, %s77
      %p88 = scmp.eq.s32.totalorder %s21, 0
      %p89 = por %p87, %p88
      %p90 = scmp.ne.s32.totalorder %s76, %s77
      %p91 = scmp.eq.s32.totalorder %s22, 1
      %p92 = por %p90, %p91
      %p94 = scmp.ne.s32.totalorder %s77, %s93
      %p95 = scmp.eq.s32.totalorder %s22, 0
      %p96 = por %p94, %p95
      %s97 = ssub.s32 %s16, %s23
      %p98 = scmp.eq.s32.totalorder %s97, 0
      %s100 = sadd.s32 %s99, 1
      %s101 = scalar_select %p98, %s99, %s100
      %p104 = pneg %p98
      %p105 = scmp.eq.s32.totalorder %s16, 1
      %p106 = por %p104, %p105
      %p107 = scmp.ne.s32.totalorder %s99, %s102
      %p108 = scmp.eq.s32.totalorder %s16, 0
      %p109 = por %p107, %p108
      %p110 = scmp.ne.s32.totalorder %s99, %s102
      %p111 = scmp.eq.s32.totalorder %s21, 1
      %p112 = por %p110, %p111
      %p113 = scmp.ne.s32.totalorder %s102, %s103
      %p114 = scmp.eq.s32.totalorder %s21, 0
      %p115 = por %p113, %p114
      %p116 = scmp.ne.s32.totalorder %s102, %s103
      %p117 = scmp.eq.s32.totalorder %s22, 1
      %p118 = por %p116, %p117
      %p120 = scmp.ne.s32.totalorder %s103, %s119
      %p121 = scmp.eq.s32.totalorder %s22, 0
      %p122 = por %p120, %p121
      %p123 = scmp.le.s32.totalorder 1, %s16
      %p124 = scmp.lt.s32.totalorder %s16, 3
      %p125 = pnand %p123, %p124
      %p126 = pneg %p125
      // Predicated region
      $region9: #{tpu_custom_call.1} parent=5 // pred_check
        _
      $region10: #{tpu_custom_call.1} parent=5 // pred_check_branch
        %128 = sbr.rel (%p125) target = $region12
      $region11: #{tpu_custom_call.1} parent=5 // pred_region
        %s129 = ssub.s32 %s16, 1
        // Predicated region
        $region13: #{tpu_custom_call.1} parent=11 // pred_check
          %p130 = pneg %p63
        $region14: #{tpu_custom_call.1} parent=11 // pred_check_branch
          %132 = sbr.rel (%p130) target = $region16
        $region15: #{tpu_custom_call.1} parent=11 // pred_region
          %s134 = ssub.s32 2048, 2048
          %135 = vsyncadd [#allocation6], %s134
          %s136 = sshll.u32 [#allocation5], 4
          %s137 = int_to_ptr.vmem [resolvable:$true] %s136
          %142 = dma.hbm_to_vmem [thread:$0]  %s1, 2048, %s137, [#allocation6], 128, 128, 8
        $region16: #{tpu_custom_call.1} parent=11 // pred_fallthru
          _
      $region12: #{tpu_custom_call.1} parent=5 // pred_fallthru
        _
      %p143 = scmp.lt.s32.totalorder %s16, 2
      // Predicated region
      $region17: #{tpu_custom_call.1} parent=5 // pred_check
        %p144 = pneg %p143
      $region18: #{tpu_custom_call.1} parent=5 // pred_check_branch
        %146 = sbr.rel (%p144) target = $region20
      $region19: #{tpu_custom_call.1} parent=5 // pred_region
        // Predicated region
        $region21: #{tpu_custom_call.1} parent=19 // pred_check
          %p147 = pneg %p36
        $region22: #{tpu_custom_call.1} parent=19 // pred_check_branch
          %149 = sbr.rel (%p147) target = $region24
        $region23: #{tpu_custom_call.1} parent=19 // pred_region
          %s150 = sand.u32 %s16, 1
          %s151 = scalar_lea.sflag [#allocation3], %s150
          %s152 = sand.u32 %s26, 1
          %s153 = smul.addr %s152, 16
          %s154 = scalar_lea.vmem [#allocation2], %s153
          %s155 = smul.u32 2, %s16
          %s157 = ssub.s32 256, 256
          %158 = vsyncadd %s151, %s157
          %s159 = smul.addr %s155, 128
          %s160 = scalar_lea.hbm %s0, %s159
          %s161 = sshll.u32 %s154, 4
          %s162 = int_to_ptr.vmem [resolvable:$true] %s161
          %167 = dma.hbm_to_vmem [thread:$0]  %s160, 256, %s162, %s151, 128, 128, 8
        $region24: #{tpu_custom_call.1} parent=19 // pred_fallthru
          _
        // Predicated region
        $region25: #{tpu_custom_call.1} parent=19 // pred_check
          %p168 = pneg %p83
        $region26: #{tpu_custom_call.1} parent=19 // pred_check_branch
          %170 = sbr.rel (%p168) target = $region28
        $region27: #{tpu_custom_call.1} parent=19 // pred_region
          %s171 = sand.u32 %s16, 1
          %s172 = scalar_lea.sflag [#allocation3], %s171
          %s173 = sand.u32 %s73, 1
          %s174 = smul.addr %s173, 16
          %s175 = scalar_lea.vmem [#allocation7], %s174
          %s176 = smul.u32 2, %s16
          %s178 = ssub.s32 256, 256
          %179 = vsyncadd %s172, %s178
          %s180 = smul.addr %s176, 128
          %s181 = scalar_lea.hbm %s2, %s180
          %s182 = sshll.u32 %s175, 4
          %s183 = int_to_ptr.vmem [resolvable:$true] %s182
          %188 = dma.hbm_to_vmem [thread:$0]  %s181, 256, %s183, %s172, 128, 128, 8
        $region28: #{tpu_custom_call.1} parent=19 // pred_fallthru
          _
      $region20: #{tpu_custom_call.1} parent=5 // pred_fallthru
        _
      %p189 = scmp.le.s32.totalorder 1, %s16
      %p190 = scmp.lt.s32.totalorder %s16, 3
      %p191 = pnand %p189, %p190
      %p192 = pneg %p191
      // Predicated region
      $region29: #{tpu_custom_call.1} parent=5 // pred_check
        _
      $region30: #{tpu_custom_call.1} parent=5 // pred_check_branch
        %194 = sbr.rel (%p191) target = $region32
      $region31: #{tpu_custom_call.1} parent=5 // pred_region
        %s195 = ssub.s32 %s16, 1
        %s196 = sand.u32 %s21, 1
        %s197 = scalar_lea.sflag [#allocation3], %s196
        %s198 = sand.u32 %s29, 1
        %s199 = smul.addr %s198, 16
        %s200 = scalar_lea.vmem [#allocation2], %s199
        // Predicated region
        $region33: #{tpu_custom_call.1} parent=31 // pred_check
          %p201 = pneg %p42
        $region34: #{tpu_custom_call.1} parent=31 // pred_check_branch
          %203 = sbr.rel (%p201) target = $region36
        $region35: #{tpu_custom_call.1} parent=31 // pred_region
          %204 = dma.done %s197, 256
        $region36: #{tpu_custom_call.1} parent=31 // pred_fallthru
          _
        // Predicated region
        $region37: #{tpu_custom_call.1} parent=31 // pred_check
          %p205 = pneg %p63
        $region38: #{tpu_custom_call.1} parent=31 // pred_check_branch
          %207 = sbr.rel (%p205) target = $region40
        $region39: #{tpu_custom_call.1} parent=31 // pred_region
          %208 = dma.done [#allocation6], 2048
        $region40: #{tpu_custom_call.1} parent=31 // pred_fallthru
          _
        %s209 = sand.u32 %s21, 1
        %s210 = scalar_lea.sflag [#allocation3], %s209
        %s211 = sand.u32 %s76, 1
        %s212 = smul.addr %s211, 16
        %s213 = scalar_lea.vmem [#allocation7], %s212
        // Predicated region
        $region41: #{tpu_custom_call.1} parent=31 // pred_check
          %p214 = pneg %p89
        $region42: #{tpu_custom_call.1} parent=31 // pred_check_branch
          %216 = sbr.rel (%p214) target = $region44
        $region43: #{tpu_custom_call.1} parent=31 // pred_region
          %217 = dma.done %s210, 256
        $region44: #{tpu_custom_call.1} parent=31 // pred_fallthru
          _
        %s218 = sand.u32 %s21, 1
        %s219 = scalar_lea.sflag [#allocation3], %s218
        %s220 = sand.u32 %s29, 1
        %s221 = smul.addr %s220, 16
        %s222 = scalar_lea.vmem [#allocation2], %s221
        %p223 = pneg %p42
        %p224 = pneg %p39
        %p225 = pneg %p63
        %p226 = pneg %p60
        %s227 = sand.u32 %s21, 1
        %s228 = scalar_lea.sflag [#allocation3], %s227
        %s229 = sand.u32 %s76, 1
        %s230 = smul.addr %s229, 16
        %s231 = scalar_lea.vmem [#allocation7], %s230
        %p232 = pneg %p89
        %p233 = pneg %p86
        %p234 = pneg %p115
        %p235 = pneg %p112
        %s236 = sand.u32 %s102, 1
        %s237 = scalar_lea.sflag [#allocation4], %s236
        %s238 = sand.u32 %s102, 1
        %s239 = smul.addr %s238, 8
        %s240 = scalar_lea.vmem [#allocation8], %s239
        %s241 = smul.u32 2, %s21
        %s242 = smul.u32 2, %s21
        %v243 = vld [vmem:[%s213] sm:$0xff]
        %v244 = vld [vmem:[%s213 + $0x8] sm:$0xff]
        %v245 = vld [vmem:[#allocation5] sm:$0xff]
        %v246 = vld [vmem:[#allocation5 + $0x8] sm:$0xff]
        %v247 = vld [vmem:[#allocation5 + $0x10] sm:$0xff]
        %v248 = vld [vmem:[#allocation5 + $0x18] sm:$0xff]
        %v249 = vld [vmem:[#allocation5 + $0x20] sm:$0xff]
        %v250 = vld [vmem:[#allocation5 + $0x28] sm:$0xff]
        %v251 = vld [vmem:[#allocation5 + $0x30] sm:$0xff]
        %v252 = vld [vmem:[#allocation5 + $0x38] sm:$0xff]
        %v253 = vld [vmem:[#allocation5 + $0x40] sm:$0xff]
        %v254 = vld [vmem:[#allocation5 + $0x48] sm:$0xff]
        %v255 = vld [vmem:[#allocation5 + $0x50] sm:$0xff]
        %v256 = vld [vmem:[#allocation5 + $0x58] sm:$0xff]
        %v257 = vld [vmem:[#allocation5 + $0x60] sm:$0xff]
        %v258 = vld [vmem:[#allocation5 + $0x68] sm:$0xff]
        %v259 = vld [vmem:[#allocation5 + $0x70] sm:$0xff]
        %v260 = vld [vmem:[#allocation5 + $0x78] sm:$0xff]
        %v261 = vld [vmem:[%s200] sm:$0xff]
        %v262 = vld [vmem:[%s200 + $0x8] sm:$0xff]
        %263 = vmatprep.subr.mxu0 0.0
        %264 = vmatpush1.xpose.msra.mxu0 %v245
        %265 = vmatprep.subr.mxu0 0.0
        %266 = vmatpush1.xpose.msra.mxu0 %v246
        %267 = vmatprep.subr.mxu0 0.0
        %268 = vmatpush1.xpose.msra.mxu0 %v247
        %269 = vmatprep.subr.mxu0 0.0
        %270 = vmatpush1.xpose.msra.mxu0 %v248
        %271 = vmatprep.subr.mxu0 0.0
        %272 = vmatpush1.xpose.msra.mxu0 %v249
        %273 = vmatprep.subr.mxu0 0.0
        %274 = vmatpush1.xpose.msra.mxu0 %v250
        %275 = vmatprep.subr.mxu0 0.0
        %276 = vmatpush1.xpose.msra.mxu0 %v251
        %277 = vmatprep.subr.mxu0 0.0
        %278 = vmatpush1.xpose.msra.mxu0 %v252
        %279 = vmatprep.subr.mxu0 0.0
        %280 = vmatpush1.xpose.msra.mxu0 %v253
        %281 = vmatprep.subr.mxu0 0.0
        %282 = vmatpush1.xpose.msra.mxu0 %v254
        %283 = vmatprep.subr.mxu0 0.0
        %284 = vmatpush1.xpose.msra.mxu0 %v255
        %285 = vmatprep.subr.mxu0 0.0
        %286 = vmatpush1.xpose.msra.mxu0 %v256
        %287 = vmatprep.subr.mxu0 0.0
        %288 = vmatpush1.xpose.msra.mxu0 %v257
        %289 = vmatprep.subr.mxu0 0.0
        %290 = vmatpush1.xpose.msra.mxu0 %v258
        %291 = vmatprep.subr.mxu0 0.0
        %292 = vmatpush1.xpose.msra.mxu0 %v259
        %293 = vmatprep.subr.mxu0 0.0
        %294 = vmatpush1.xpose.msra.mxu0 %v260
        %295 = vmatprep.subr.mxu0 0.0
        %296 = vmatpush1.xpose.msra.mxu0 0.0
        %297 = vmatprep.subr.mxu0 0.0
        %298 = vmatpush1.xpose.msra.mxu0 0.0
        %299 = vmatprep.subr.mxu0 0.0
        %300 = vmatpush1.xpose.msra.mxu0 0.0
        %301 = vmatprep.subr.mxu0 0.0
        %302 = vmatpush1.xpose.msra.mxu0 0.0
        %303 = vmatprep.subr.mxu0 0.0
        %304 = vmatpush1.xpose.msra.mxu0 0.0
        %305 = vmatprep.subr.mxu0 0.0
        %306 = vmatpush1.xpose.msra.mxu0 0.0
        %307 = vmatprep.subr.mxu0 0.0
        %308 = vmatpush1.xpose.msra.mxu0 0.0
        %309 = vmatprep.subr.mxu0 0.0
        %310 = vmatpush1.xpose.msra.mxu0 0.0
        %311 = vmatprep.subr.mxu0 0.0
        %312 = vmatpush1.xpose.msra.mxu0 0.0
        %313 = vmatprep.subr.mxu0 0.0
        %314 = vmatpush1.xpose.msra.mxu0 0.0
        %315 = vmatprep.subr.mxu0 0.0
        %316 = vmatpush1.xpose.msra.mxu0 0.0
        %317 = vmatprep.subr.mxu0 0.0
        %318 = vmatpush1.xpose.msra.mxu0 0.0
        %319 = vmatprep.subr.mxu0 0.0
        %320 = vmatpush1.xpose.msra.mxu0 0.0
        %321 = vmatprep.subr.mxu0 0.0
        %322 = vmatpush1.xpose.msra.mxu0 0.0
        %323 = vmatprep.subr.mxu0 0.0
        %324 = vmatpush1.xpose.msra.mxu0 0.0
        %325 = vmatprep.subr.mxu0 0.0
        %326 = vmatpush1.xpose.msra.mxu0 0.0
        %327 = vmatprep.mubr.f32.mxu0 0.0
        %328 = vmatmul.mubr.f32.gmra.mrb[0].mxu0 %v243
        %v329 = vpop.f32.mrb[0].mxu0
        %v330 = vadd.f32 0.0, %v329
        %v331 = vpop.f32.mrb[0].mxu0
        %332 = vmatprep.mubr.f32.mxu0 0.0
        %333 = vmatmul.mubr.f32.gmra.mrb[0].mxu0 %v244
        %v334 = vpop.f32.mrb[0].mxu0
        %v335 = vadd.f32 0.0, %v334
        %v336 = vpop.f32.mrb[0].mxu0
        %337 = vdwg.mxu0
        %v338 = vmul.f32 %v330, 2.0
        %v339 = vmul.f32 %v335, 2.0
        %v340 = vlaneseq
        %v341 = vand.u32 %v340, 127
        %vm342 = vcmp.lt.s32.totalorder %v341, 10
        %v343 = vsel %vm342, %v338, -1e+30
        %v344 = vsel %vm342, %v339, -1e+30
        %345 = vmax.xlane.f32.xlu0 %v343
        %v346 = vpop.xlane.xlu0 %345
        %347 = vmax.xlane.f32.xlu0 %v344
        %v348 = vpop.xlane.xlu0 %347
        %v349 = vsub.f32 %v343, %v346
        %v350 = vsub.f32 %v344, %v348
        %v351 = vmul.f32 %v349, 1.442695
        %v352 = vpow.pop %v351
        %v353 = vmul.f32 %v350, 1.442695
        %v354 = vpow.pop %v353
        %355 = vadd.xlane.f32.xlu0 %v352
        %v356 = vpop.xlane.xlu0 %355
        %357 = vadd.xlane.f32.xlu0 %v354
        %v358 = vpop.xlane.xlu0 %357
        %v359 = vsel %vm342, %v261, -inf
        %v360 = vsel %vm342, %v262, -inf
        %361 = vmax.xlane.f32.xlu0 %v359
        %v362 = vpop.xlane.xlu0 %361
        %363 = vmax.xlane.f32.xlu0 %v360
        %v364 = vpop.xlane.xlu0 %363
        %vm365 = vcmp.eq.f32.partialorder %v359, %v362
        %vm366 = vcmp.eq.f32.partialorder %v360, %v364
        %v367 = vsel %vm365, %v341, 128
        %v368 = vsel %vm366, %v341, 128
        %v369 = vand.u32 %v367, 65535
        %v370 = vshra.s32 %v367, 16
        %v371 = vcvt.s32.f32 %v369
        %v372 = vcvt.s32.f32 %v370
        %373 = vmin.xlane.f32.xlu0 %v372
        %v374 = vpop.xlane.xlu0 %373
        %vm375 = vcmp.eq.f32.partialorder %v372, %v374
        %v376 = vsel %vm375, %v371, inf
        %377 = vmin.xlane.f32.xlu0 %v376
        %v378 = vpop.xlane.xlu0 %377
        %v379 = vcvt.f32.s32 %v378
        %v380 = vcvt.f32.s32 %v374
        %v381 = vshll.u32 %v380, 16
        %v382 = vadd.s32 %v381, %v379
        %v383 = vand.u32 %v368, 65535
        %v384 = vshra.s32 %v368, 16
        %v385 = vcvt.s32.f32 %v383
        %v386 = vcvt.s32.f32 %v384
        %387 = vmin.xlane.f32.xlu0 %v386
        %v388 = vpop.xlane.xlu0 %387
        %vm389 = vcmp.eq.f32.partialorder %v386, %v388
        %v390 = vsel %vm389, %v385, inf
        %391 = vmin.xlane.f32.xlu0 %v390
        %v392 = vpop.xlane.xlu0 %391
        %v393 = vcvt.f32.s32 %v392
        %v394 = vcvt.f32.s32 %v388
        %v395 = vshll.u32 %v394, 16
        %v396 = vadd.s32 %v395, %v393
        %vm397 = vcmp.eq.s32.totalorder %v341, %v382
        %vm398 = vcmp.eq.s32.totalorder %v341, %v396
        %v399 = vsel %vm397, 1, 0
        %v400 = vsel %vm398, 1, 0
        %v401 = vcvt.s32.f32 %v399
        %v402 = vcvt.s32.f32 %v400
        %v403 = vmul.f32 %v352, %v401
        %v404 = vmul.f32 %v354, %v402
        %405 = vadd.xlane.f32.xlu0 %v403
        %v406 = vpop.xlane.xlu0 %405
        %407 = vadd.xlane.f32.xlu0 %v404
        %v408 = vpop.xlane.xlu0 %407
        %v409 = vrcp.pop %v356
        %v410 = vmul.f32 %v406, %v409
        %v411 = vrcp.pop %v358
        %v412 = vmul.f32 %v408, %v411
        %v413 = vadd.f32 %v410, 1e-07
        %v414 = vadd.f32 %v412, 1e-07
        %v415 = vlog2.pop %v413
        %v416 = vmul.f32 %v415, 0.6931472
        %v417 = vlog2.pop %v414
        %v418 = vmul.f32 %v417, 0.6931472
        %v419 = vsub.f32 0.0, %v416
        %v420 = vsub.f32 0.0, %v418
        %vm421 = vcmp.ge.f32.partialorder %v362, 0.3
        %vm422 = vcmp.ge.f32.partialorder %v364, 0.3
        %v423 = vsel %vm421, 1, 0
        %v424 = vsel %vm422, 1, 0
        %v425 = vcvt.s32.f32 %v423
        %v426 = vcvt.s32.f32 %v424
        %s427 = smul.u32 %s21, 16
        %v428 = vlaneseq
        %v429 = vshrl.u32 %v428, 7
        %v430 = vadd.s32 %v429, 8
        %v431 = vstv %s427
        %v432 = vadd.s32 %v431, %v429
        %v433 = vadd.s32 %v431, %v430
        %vm434 = vcmp.lt.s32.totalorder %v432, 24
        %vm435 = vcmp.lt.s32.totalorder %v433, 24
        %v436 = vsel %vm434, 1, 0
        %v437 = vsel %vm435, 1, 0
        %v438 = vcvt.s32.f32 %v436
        %v439 = vcvt.s32.f32 %v437
        %v440 = vmul.f32 %v419, %v425
        %v441 = vmul.f32 %v420, %v426
        %v442 = vmul.f32 %v440, %v438
        %v443 = vmul.f32 %v441, %v439
        %vm444 = vcmask 7168
        %v445 = vsel %vm444, %v442, 0.0
        %v446 = vsel %vm444, %v443, 0.0
        %v447 = vadd.f32 %v445, %v446
        %448 = vadd.xlane.f32.xlu0 %v447
        %v449 = vpop.xlane.xlu0 %448
        %v450 = vrot.slane %v449, 4
        %v451 = vadd.f32 %v449, %v450
        %v452 = vrot.slane %v451, 2
        %v453 = vadd.f32 %v451, %v452
        %v454 = vrot.slane %v453, 1
        %v455 = vadd.f32 %v453, %v454
        %s456 = vtos %v455
        %v457 = vstv %s456
        %458 = vst [vmem:[%s240] sm:$0xff] %v457
        %s459 = sand.u32 %s102, 1
        %s460 = scalar_lea.sflag [#allocation4], %s459
        %s461 = sand.u32 %s102, 1
        %s462 = smul.addr %s461, 8
        %s463 = scalar_lea.vmem [#allocation8], %s462
        // Predicated region
        $region45: #{tpu_custom_call.1} parent=31 // pred_check
          %p464 = pneg %p112
        $region46: #{tpu_custom_call.1} parent=31 // pred_check_branch
          %466 = sbr.rel (%p464) target = $region48
        $region47: #{tpu_custom_call.1} parent=31 // pred_region
          %s468 = ssub.s32 128, 128
          %469 = vsyncadd %s460, %s468
          %s470 = smul.addr %s21, 128
          %s471 = scalar_lea.hbm %s3, %s470
          %s473 = sshll.u32 %s463, 4
          %s474 = int_to_ptr.vmem [resolvable:$true] %s473
          %476 = dma.vmem_to_hbm [thread:$0]  %s474, 128, %s471, %s460
        $region48: #{tpu_custom_call.1} parent=31 // pred_fallthru
          _
      $region32: #{tpu_custom_call.1} parent=5 // pred_fallthru
        _
      %p477 = scmp.le.s32.totalorder 2, %s16
      // Predicated region
      $region49: #{tpu_custom_call.1} parent=5 // pred_check
        %p478 = pneg %p477
      $region50: #{tpu_custom_call.1} parent=5 // pred_check_branch
        %480 = sbr.rel (%p478) target = $region52
      $region51: #{tpu_custom_call.1} parent=5 // pred_region
        %s481 = ssub.s32 %s16, 2
        // Predicated region
        $region53: #{tpu_custom_call.1} parent=51 // pred_check
          %p482 = pneg %p118
        $region54: #{tpu_custom_call.1} parent=51 // pred_check_branch
          %484 = sbr.rel (%p482) target = $region56
        $region55: #{tpu_custom_call.1} parent=51 // pred_region
          %s485 = sand.u32 %s103, 1
          %s486 = scalar_lea.sflag [#allocation4], %s485
          %s487 = sand.u32 %s103, 1
          %s488 = smul.addr %s487, 8
          %s489 = scalar_lea.vmem [#allocation8], %s488
          %490 = dma.done %s486, 128
        $region56: #{tpu_custom_call.1} parent=51 // pred_fallthru
          _
      $region52: #{tpu_custom_call.1} parent=5 // pred_fallthru
        _
    $region6: #{tpu_custom_call.1} parent=1 // loop_footer
      %s20 = sadd.s32 1, %s16
    $region7: #{tpu_custom_call.1} parent=1 // loop_footer_branch
      %15 = sbr.rel target = $region3
    $region8: #{tpu_custom_call.1} parent=1 // loop_exit
      _
    %491 = vsyncpa [#allocation3], 1
    %s492 = scalar_lea.sflag [#allocation3], 1
    %493 = vsyncpa %s492, 1
    %494 = vsyncpa [#allocation6], 1
    %495 = vsyncpa [#allocation4], 1
    %s496 = scalar_lea.sflag [#allocation4], 1
    %497 = vsyncpa %s496, 1

</llo_original>
